<compile_context>
chip_gen: v7x
topology: tpu7x:2x2x1
jax: 0.10.0
libtpu: 0.0.40
codegen_flags: <defaults>
</compile_context>

<pallas_src>
import jax
import jax.numpy as jnp
from jax.experimental import pallas as pl
from jax.experimental.pallas import tpu as pltpu


_SQRT_2_OVER_PI = 0.7978845608028654  # sqrt(2/pi)


def _mlp_kernel(x_ref, wfc_ref, bfc_ref, wproj_ref, bproj_ref, o_ref):
    # x_ref:     (tm, C)  f32    input row tile (cast to bf16 in-kernel)
    # wfc_ref:   (C, th)  bf16   c_fc weight chunk (stored (in, out))
    # bfc_ref:   (1, th)  f32    c_fc bias chunk
    # wproj_ref: (th, C)  bf16   c_proj weight chunk (stored (in, out))
    # bproj_ref: (1, C)   f32    c_proj bias (grid-invariant)
    # o_ref:     (tm, C)  f32    output tile, doubles as the accumulator
    #                            (its index map ignores the h axis, so it is
    #                            VMEM-resident across the whole inner loop)
    h_idx = pl.program_id(1)

    @pl.when(h_idx == 0)
    def _():
        o_ref[...] = jnp.zeros_like(o_ref)

    x_bf16 = x_ref[...].astype(jnp.bfloat16)

    # c_fc chunk: (tm, th); bf16 MXU inputs, f32 accumulation.
    h = jnp.dot(x_bf16, wfc_ref[...],
                preferred_element_type=jnp.float32) + bfc_ref[...]

    # GELU(approximate='tanh'): 0.5*h*(1 + tanh(sqrt(2/pi)*(h + 0.044715*h^3)))
    h2 = h * h
    g = 0.5 * h * (1.0 + jnp.tanh(_SQRT_2_OVER_PI * h * (1.0 + 0.044715 * h2)))

    # Partial c_proj: accumulate this hidden chunk's contribution into o_ref.
    o_ref[...] += jnp.dot(g.astype(jnp.bfloat16), wproj_ref[...],
                          preferred_element_type=jnp.float32)

    @pl.when(h_idx == pl.num_programs(1) - 1)
    def _():
        o_ref[...] += bproj_ref[...]


def _default_tiles():
    """Per-generation (tm, th) targets (roofline-ridge driven)."""
    kind = ""
    try:
        kind = jax.devices()[0].device_kind.lower()
    except Exception:
        pass
    if "v5" in kind:
        return 384, 2048    # ridge ~240 fl/B; spend headroom on a big th
    if "v7" in kind:
        return 512, 1024    # per-TC ridge ~310 fl/B; tighter 64 MiB VMEM
    return 1024, 1024       # v6e / default: ridge ~640 fl/B


def mlp_pallas(x, w_fc, b_fc, w_proj, b_proj, *, tm=None, th=None,
               vmem_limit_bytes=48 * 1024 * 1024):
    """GPT MLP forward.

    x:      (B, T, C) float32
    w_fc:   (C, 4C)   c_fc weight, transposed vs nn.Linear's (out, in)
    b_fc:   (4C,)
    w_proj: (4C, C)   c_proj weight, transposed vs nn.Linear's (out, in)
    b_proj: (C,)
    """
    B, T, C = x.shape
    H = w_fc.shape[1]
    assert w_fc.shape == (C, H) and w_proj.shape == (H, C)
    M = B * T

    tm_default, th_default = _default_tiles()
    if tm is None:
        tm = tm_default
    if th is None:
        th = th_default

    # --- Row tile: multiple of 8 (sublane), no bigger than (padded) M. ---
    M8 = -(-M // 8) * 8
    tm = -(-int(tm) // 8) * 8
    tm = min(tm, M8)
    # Keep >=2 tiles on the "parallel" row axis when possible (v7x has 2 TCs).
    if tm >= M8 and M8 >= 16:
        tm = -(-(M8 // 2) // 8) * 8

    # --- Hidden chunk: largest 128-aligned divisor of H that is <= th. ---
    th = int(min(int(th), H))
    if H % 128 == 0:
        th = max(128, (th // 128) * 128)
        while H % th != 0:
            th -= 128
    else:
        # Toy / unaligned fallback only (H < 128 or H not a 128-multiple).
        th = H

    # --- Shrink tiles if the double-buffered VMEM footprint is too big. ---
    def _vmem_est(tm_, th_):
        x_tile = tm_ * C * 4 * 2          # f32 input tile, double-buffered
        out_tile = tm_ * C * 4 * 2        # f32 output/accumulator tile
        wfc = C * th_ * 2 * 2             # bf16 weight chunks
        wproj = th_ * C * 2 * 2
        bias = (th_ + C) * 4 * 2
        return x_tile + out_tile + wfc + wproj + bias

    budget = int(vmem_limit_bytes * 0.85)
    while _vmem_est(tm, th) > budget and tm > 256:
        tm = max(256, (tm // 2 // 8) * 8)
    while _vmem_est(tm, th) > budget and th > 128 and H % 128 == 0:
        cand = th - 128
        while cand >= 128 and H % cand != 0:
            cand -= 128
        if cand < 128:
            break
        th = cand

    M_pad = -(-M // tm) * tm
    n_row_tiles = M_pad // tm

    # x stays f32 (bf16 cast happens in-kernel); pad rows only if needed.
    x2d = x.reshape(M, C)
    if M_pad != M:
        x2d = jnp.pad(x2d, ((0, M_pad - M), (0, 0)))
    # Weights cast to bf16 once here: they dominate HBM traffic (re-streamed
    # per row tile), so halving their bytes is worth the single wrapper pass.
    w_fc_b = w_fc.astype(jnp.bfloat16)
    w_proj_b = w_proj.astype(jnp.bfloat16)
    b_fc2d = b_fc.reshape(1, H).astype(jnp.float32)
    b_proj2d = b_proj.reshape(1, C).astype(jnp.float32)

    # Advisory cost: two matmuls + one tanh per hidden element.  Weights are
    # re-read once per row tile (real re-streaming traffic).
    flops = 4 * M_pad * C * H
    bytes_accessed = (M_pad * C * 4                       # x (read once/row tile)
                      + n_row_tiles * 2 * C * H * 2       # bf16 Wfc + Wproj per row tile
                      + n_row_tiles * (H + C) * 4         # biases per row tile
                      + M_pad * C * 4)                    # f32 output writeback
    cost = pl.CostEstimate(flops=flops, transcendentals=M_pad * H,
                           bytes_accessed=bytes_accessed)

    out2d = pl.pallas_call(
        _mlp_kernel,
        out_shape=jax.ShapeDtypeStruct((M_pad, C), jnp.float32),
        grid_spec=pltpu.PrefetchScalarGridSpec(
            num_scalar_prefetch=0,
            grid=(n_row_tiles, H // th),
            in_specs=[
                pl.BlockSpec((tm, C), lambda i, h: (i, 0)),   # x row tile
                pl.BlockSpec((C, th), lambda i, h: (0, h)),   # Wfc chunk
                pl.BlockSpec((1, th), lambda i, h: (0, h)),   # bfc chunk
                pl.BlockSpec((th, C), lambda i, h: (h, 0)),   # Wproj chunk
                pl.BlockSpec((1, C), lambda i, h: (0, 0)),    # bproj
            ],
            out_specs=pl.BlockSpec((tm, C), lambda i, h: (i, 0)),
        ),
        compiler_params=pltpu.CompilerParams(
            dimension_semantics=("parallel", "arbitrary"),
            vmem_limit_bytes=vmem_limit_bytes,
        ),
        cost_estimate=cost,
    )(x2d, w_fc_b, b_fc2d, w_proj_b, b_proj2d)

    if M_pad != M:
        out2d = out2d[:M]
    return out2d.reshape(B, T, C).astype(x.dtype)


def _reference_mlp(x2d, w_fc, b_fc, w_proj, b_proj):
    # Matches the kernel's precision choices: bf16 MXU inputs, f32 accumulation.
    h = jnp.dot(x2d.astype(jnp.bfloat16), w_fc.astype(jnp.bfloat16),
                preferred_element_type=jnp.float32) + b_fc
    h2 = h * h
    g = 0.5 * h * (1.0 + jnp.tanh(_SQRT_2_OVER_PI * h * (1.0 + 0.044715 * h2)))
    return jnp.dot(g.astype(jnp.bfloat16), w_proj.astype(jnp.bfloat16),
                   preferred_element_type=jnp.float32) + b_proj


if __name__ == "__main__":
    # Small config: n_embd = 128 (lane-aligned), hidden = 512, batch=2, seq=8.
    B, T, C = 2, 8, 128
    H = 4 * C

    key = jax.random.PRNGKey(0)
    kx, k1, k2, k3, k4 = jax.random.split(key, 5)

    x = jax.random.normal(kx, (B, T, C), dtype=jnp.float32)

    # Deterministic parameter init (uniform, roughly matching nn.Linear scale).
    lim_fc = 1.0 / (C ** 0.5)
    lim_pr = 1.0 / (H ** 0.5)
    w_fc = jax.random.uniform(k1, (C, H), minval=-lim_fc, maxval=lim_fc, dtype=jnp.float32)
    b_fc = jax.random.uniform(k2, (H,), minval=-lim_fc, maxval=lim_fc, dtype=jnp.float32)
    w_proj = jax.random.uniform(k3, (H, C), minval=-lim_pr, maxval=lim_pr, dtype=jnp.float32)
    b_proj = jax.random.uniform(k4, (C,), minval=-lim_pr, maxval=lim_pr, dtype=jnp.float32)

    # Force th=128 so the multi-chunk accumulation path (4 hidden chunks) and
    # multiple row tiles are both exercised at this small size.
    out = mlp_pallas(x, w_fc, b_fc, w_proj, b_proj, th=128)
    out = jax.block_until_ready(out)

    ref = _reference_mlp(x.reshape(B * T, C), w_fc, b_fc.reshape(1, H),
                         w_proj, b_proj.reshape(1, C)).reshape(B, T, C)
    assert out.shape == (B, T, C)
    max_err = float(jnp.max(jnp.abs(out - ref)))
    assert jnp.allclose(out, ref, atol=2e-3, rtol=2e-3), \
        f"mismatch vs reference (max abs err {max_err})"

    print("KERNEL_OK")
</pallas_src>

<mosaic_0001>
module attributes {stable_mosaic.version = 11 : i64} {
  func.func @_mlp_kernel(%arg0: i32, %arg1: i32, %arg2: memref<8x128xf32, #tpu.memory_space<vmem>>, %arg3: memref<128x128xbf16, #tpu.memory_space<vmem>>, %arg4: memref<1x128xf32, #tpu.memory_space<vmem>>, %arg5: memref<128x128xbf16, #tpu.memory_space<vmem>>, %arg6: memref<1x128xf32, #tpu.memory_space<vmem>>, %arg7: memref<8x128xf32, #tpu.memory_space<vmem>>) attributes {dimension_semantics = [#tpu.dimension_semantics<parallel>, #tpu.dimension_semantics<arbitrary>], iteration_bounds = array<i64: 2, 4>, scalar_prefetch = 0 : i64, scratch_operands = 0 : i64, tpu.core_type = #tpu.core_type<tc>, window_params = [{transform_indices = @transform_0, window_bounds = array<i64: 8, 128>}, {transform_indices = @transform_1, window_bounds = array<i64: 128, 128>}, {transform_indices = @transform_2, window_bounds = array<i64: 1, 128>}, {transform_indices = @transform_3, window_bounds = array<i64: 128, 128>}, {pipeline_mode = #tpu.pipeline_mode<synchronous>, transform_indices = @transform_4, window_bounds = array<i64: 1, 128>}, {transform_indices = @transform_5, window_bounds = array<i64: 8, 128>}]} {
    %c0_i32 = arith.constant 0 : i32
    %0 = arith.cmpi eq, %arg1, %c0_i32 : i32
    %1 = arith.extui %0 : i1 to i32
    %c0_i32_0 = arith.constant 0 : i32
    %2 = arith.cmpi ne, %1, %c0_i32_0 : i32
    scf.if %2 {
      %cst_19 = arith.constant 0.000000e+00 : f32
      %33 = vector.broadcast %cst_19 : f32 to vector<8x128xf32>
      %c0_20 = arith.constant 0 : index
      %c0_21 = arith.constant 0 : index
      %34 = vector.load %arg7[%c0_20, %c0_21] : memref<8x128xf32, #tpu.memory_space<vmem>>, vector<8x128xf32>
      tpu.vector_store %arg7[%c0_20, %c0_21], %33 {strides = array<i32>} : memref<8x128xf32, #tpu.memory_space<vmem>>, vector<8x128xf32>,
    } else {
    }
    %c0 = arith.constant 0 : index
    %c0_1 = arith.constant 0 : index
    %3 = vector.load %arg2[%c0, %c0_1] : memref<8x128xf32, #tpu.memory_space<vmem>>, vector<8x128xf32>
    %4 = arith.truncf %3 : vector<8x128xf32> to vector<8x128xbf16>
    %c0_2 = arith.constant 0 : index
    %c0_3 = arith.constant 0 : index
    %5 = vector.load %arg3[%c0_2, %c0_3] : memref<128x128xbf16, #tpu.memory_space<vmem>>, vector<128x128xbf16>
    %cst = arith.constant dense<0.000000e+00> : vector<8x128xf32>
    %6 = tpu.matmul %4, %5, %cst {dimension_numbers = #tpu.dot_dimension_numbers<[1], [0], [0], [1], [0, 0, 1, 1], [], []>} : vector<8x128xbf16>, vector<128x128xbf16>, vector<8x128xf32> -> vector<8x128xf32>
    %c0_4 = arith.constant 0 : index
    %c0_5 = arith.constant 0 : index
    %7 = vector.load %arg4[%c0_4, %c0_5] : memref<1x128xf32, #tpu.memory_space<vmem>>, vector<1x128xf32>
    %8 = vector.broadcast %7 : vector<1x128xf32> to vector<8x128xf32>
    %9 = arith.addf %6, %8 : vector<8x128xf32>
    %10 = arith.mulf %9, %9 : vector<8x128xf32>
    %cst_6 = arith.constant 5.000000e-01 : f32
    %11 = vector.broadcast %cst_6 : f32 to vector<8x128xf32>
    %12 = arith.mulf %11, %9 : vector<8x128xf32>
    %cst_7 = arith.constant 0.797884583 : f32
    %13 = vector.broadcast %cst_7 : f32 to vector<8x128xf32>
    %14 = arith.mulf %13, %9 : vector<8x128xf32>
    %cst_8 = arith.constant 4.471500e-02 : f32
    %15 = vector.broadcast %cst_8 : f32 to vector<8x128xf32>
    %16 = arith.mulf %15, %10 : vector<8x128xf32>
    %cst_9 = arith.constant 1.000000e+00 : f32
    %17 = vector.broadcast %cst_9 : f32 to vector<8x128xf32>
    %18 = arith.addf %17, %16 : vector<8x128xf32>
    %19 = arith.mulf %14, %18 : vector<8x128xf32>
    %20 = math.tanh %19 : vector<8x128xf32>
    %cst_10 = arith.constant 1.000000e+00 : f32
    %21 = vector.broadcast %cst_10 : f32 to vector<8x128xf32>
    %22 = arith.addf %21, %20 : vector<8x128xf32>
    %23 = arith.mulf %12, %22 : vector<8x128xf32>
    %c0_11 = arith.constant 0 : index
    %c0_12 = arith.constant 0 : index
    %24 = vector.load %arg7[%c0_11, %c0_12] : memref<8x128xf32, #tpu.memory_space<vmem>>, vector<8x128xf32>
    %25 = arith.truncf %23 : vector<8x128xf32> to vector<8x128xbf16>
    %c0_13 = arith.constant 0 : index
    %c0_14 = arith.constant 0 : index
    %26 = vector.load %arg5[%c0_13, %c0_14] : memref<128x128xbf16, #tpu.memory_space<vmem>>, vector<128x128xbf16>
    %cst_15 = arith.constant dense<0.000000e+00> : vector<8x128xf32>
    %27 = tpu.matmul %25, %26, %cst_15 {dimension_numbers = #tpu.dot_dimension_numbers<[1], [0], [0], [1], [0, 0, 1, 1], [], []>} : vector<8x128xbf16>, vector<128x128xbf16>, vector<8x128xf32> -> vector<8x128xf32>
    %28 = arith.addf %24, %27 : vector<8x128xf32>
    %c0_16 = arith.constant 0 : index
    %c0_17 = arith.constant 0 : index
    %29 = vector.load %arg7[%c0_16, %c0_17] : memref<8x128xf32, #tpu.memory_space<vmem>>, vector<8x128xf32>
    tpu.vector_store %arg7[%c0_16, %c0_17], %28 {strides = array<i32>} : memref<8x128xf32, #tpu.memory_space<vmem>>, vector<8x128xf32>,
    %c3_i32 = arith.constant 3 : i32
    %30 = arith.cmpi eq, %arg1, %c3_i32 : i32
    %31 = arith.extui %30 : i1 to i32
    %c0_i32_18 = arith.constant 0 : i32
    %32 = arith.cmpi ne, %31, %c0_i32_18 : i32
    scf.if %32 {
      %c0_19 = arith.constant 0 : index
      %c0_20 = arith.constant 0 : index
      %33 = vector.load %arg7[%c0_19, %c0_20] : memref<8x128xf32, #tpu.memory_space<vmem>>, vector<8x128xf32>
      %c0_21 = arith.constant 0 : index
      %c0_22 = arith.constant 0 : index
      %34 = vector.load %arg6[%c0_21, %c0_22] : memref<1x128xf32, #tpu.memory_space<vmem>>, vector<1x128xf32>
      %35 = vector.broadcast %34 : vector<1x128xf32> to vector<8x128xf32>
      %36 = arith.addf %33, %35 : vector<8x128xf32>
      %c0_23 = arith.constant 0 : index
      %c0_24 = arith.constant 0 : index
      %37 = vector.load %arg7[%c0_23, %c0_24] : memref<8x128xf32, #tpu.memory_space<vmem>>, vector<8x128xf32>
      tpu.vector_store %arg7[%c0_23, %c0_24], %36 {strides = array<i32>} : memref<8x128xf32, #tpu.memory_space<vmem>>, vector<8x128xf32>,
    } else {
    }
    return
  }
  func.func @transform_0(%arg0: i32, %arg1: i32) -> (i32, i32) {
    %c0_i32 = arith.constant 0 : i32
    %c0_i32_0 = arith.constant 0 : i32
    return %arg0, %c0_i32 : i32, i32
  }
  func.func @transform_1(%arg0: i32, %arg1: i32) -> (i32, i32) {
    %c0_i32 = arith.constant 0 : i32
    %c0_i32_0 = arith.constant 0 : i32
    return %c0_i32, %arg1 : i32, i32
  }
  func.func @transform_2(%arg0: i32, %arg1: i32) -> (i32, i32) {
    %c0_i32 = arith.constant 0 : i32
    %c0_i32_0 = arith.constant 0 : i32
    return %c0_i32, %arg1 : i32, i32
  }
  func.func @transform_3(%arg0: i32, %arg1: i32) -> (i32, i32) {
    %c0_i32 = arith.constant 0 : i32
    %c0_i32_0 = arith.constant 0 : i32
    return %arg1, %c0_i32 : i32, i32
  }
  func.func @transform_4(%arg0: i32, %arg1: i32) -> (i32, i32) {
    %c0_i32 = arith.constant 0 : i32
    %c0_i32_0 = arith.constant 0 : i32
    %c0_i32_1 = arith.constant 0 : i32
    return %c0_i32, %c0_i32_0 : i32, i32
  }
  func.func @transform_5(%arg0: i32, %arg1: i32) -> (i32, i32) {
    %c0_i32 = arith.constant 0 : i32
    %c0_i32_0 = arith.constant 0 : i32
    return %arg0, %c0_i32 : i32, i32
  }
}

</mosaic_0001>

<llo_original>
// kernel: tpu_custom_call.1
$region0: #{tpu_custom_call.1}
  #allocation0 [shape = 'u32[]', space=smem, size = 0x4, offset = 0x4, fixed_abs, tag = 'smem constant byte address 0x4 - core index']
  #allocation1 [shape = 'u32[144,128]{1,0:T(1,128)}', space=vmem, size = 0x12000, scoped, tag = 'internal scratch']
  %s0 = inlined_call_operand.hbm [shape: f32[16,128], index: 0, kind: input, shape index: {}]
  %s1 = inlined_call_operand.hbm [shape: bf16[128,512], index: 1, kind: input, shape index: {}]
  %s2 = inlined_call_operand.vmem [shape: f32[1,512], index: 2, kind: input, shape index: {}]
  %s3 = inlined_call_operand.hbm [shape: bf16[512,128], index: 3, kind: input, shape index: {}]
  %s4 = inlined_call_operand.vmem [shape: f32[1,128], index: 4, kind: input, shape index: {}]
  %s5 = inlined_call_operand.hbm [shape: f32[16,128], index: 5, kind: output, shape index: {}]
  %s6 = sld [smem:[#allocation0]]
  $region73: #{tpu_custom_call.1} parent=0
    _
  %s8 = ssub.s32 1, %s6
  %s9 = scalar_select 0, %s8, %s6
  $region1: #{tpu_custom_call.1} parent=0
    #allocation2 [shape = 'u8[8192]{0}', space=vmem, size = 0x2000, scoped, tag = 'input window, operand 0']
    #allocation3 [shape = 's32[2]{0}', space=sflag, size = 0x8, scoped, tag = 'scoped memory for tpu_custom_call.1']
    #allocation4 [shape = 's32[2]{0}', space=sflag, size = 0x8, scoped, tag = 'scoped memory for tpu_custom_call.1']
    #allocation5 [shape = 'u8[65536]{0}', space=vmem, size = 0x10000, scoped, tag = 'input window, operand 1']
    #allocation6 [shape = 's32[2]{0}', space=sflag, size = 0x8, scoped, tag = 'scoped memory for tpu_custom_call.1']
    #allocation7 [shape = 'u8[65536]{0}', space=vmem, size = 0x10000, scoped, tag = 'input window, operand 3']
    #allocation8 [shape = 'u8[8192]{0}', space=vmem, size = 0x2000, scoped, tag = 'output window, operand 0']
    %10 = vsyncpa [#allocation3], 0
    %s11 = scalar_lea.sflag [#allocation3], 1
    %12 = vsyncpa %s11, 0
    %13 = vsyncpa [#allocation6], 0
    %s14 = scalar_lea.sflag [#allocation6], 1
    %15 = vsyncpa %s14, 0
    %16 = vsyncpa [#allocation4], 0
    %s17 = scalar_lea.sflag [#allocation4], 1
    %18 = vsyncpa %s17, 0
    loop: start=0, step=1, limit=10
    $region2: #{tpu_custom_call.1} parent=1 // loop_pre_header
      _
    $region3: #{tpu_custom_call.1} parent=1 // loop_header
      %s20 = sphi 0, %s24
      %p21 = scmp.ge.s32.totalorder %s20, 10
      %s27 = sphi 0, %s39
      %s28 = sphi 0, %s35
      %s29 = sphi 0, %s27
      %s30 = sphi 0, %s28
      %s31 = sphi 0, %s29
      %s32 = sphi 0, %s30
      %s42 = sphi 0, %s44
      %s45 = sphi 0, %s42
      %s46 = sphi 0, %s45
      %s62 = sphi 0, %s46
      %s68 = sphi 0, %s70
      %s71 = sphi 0, %s68
      %s72 = sphi 0, %s71
      %s88 = sphi 0, %s72
      %s94 = sphi 0, %s96
      %s97 = sphi 0, %s94
      %s98 = sphi 0, %s97
      %s114 = sphi 0, %s98
      %s120 = sphi 0, %s122
      %s123 = sphi 0, %s120
      %s124 = sphi 0, %s123
      %s140 = sphi 0, %s124
      %s144 = sphi 0, %s144
      %s146 = sphi 0, %s144
      %s147 = sphi 0, %s146
      %s161 = sphi 0, %s147
      %s167 = sphi 0, %s169
      %s170 = sphi 0, %s167
      %s171 = sphi 0, %s170
      %s187 = sphi 0, %s171
    $region4: #{tpu_custom_call.1} parent=1 // loop_header_branch
      %23 = sbr.rel (%p21) target = $region8
    $region5: #{tpu_custom_call.1} parent=1 // loop_body
      %s25 = ssub.s32 %s20, 1
      %s26 = ssub.s32 %s20, 2
      %s33 = sadd.s32 1, %s28
      %p34 = scmp.ge.s32.totalorder %s33, 4
      %s35 = scalar_select %p34, 0, %s33
      %s36 = sadd.s32 1, %s27
      %s37 = scalar_select %p34, %s36, %s27
      %p38 = scmp.ge.s32.totalorder %s37, 2
      %s39 = scalar_select %p38, 0, %s37
      %s40 = ssub.s32 %s27, %s39
      %p41 = scmp.eq.s32.totalorder %s40, 0
      %s43 = sadd.s32 %s42, 1
      %s44 = scalar_select %p41, %s42, %s43
      %p47 = pneg %p41
      %p48 = scmp.eq.s32.totalorder %s20, 7
      %p49 = por %p47, %p48
      %p50 = scmp.ne.s32.totalorder %s42, %s45
      %p51 = scmp.eq.s32.totalorder %s20, 0
      %p52 = por %p50, %p51
      %p53 = scmp.ne.s32.totalorder %s42, %s45
      %p54 = scmp.eq.s32.totalorder %s25, 7
      %p55 = por %p53, %p54
      %p56 = scmp.ne.s32.totalorder %s45, %s46
      %p57 = scmp.eq.s32.totalorder %s25, 0
      %p58 = por %p56, %p57
      %p59 = scmp.ne.s32.totalorder %s45, %s46
      %p60 = scmp.eq.s32.totalorder %s26, 7
      %p61 = por %p59, %p60
      %p63 = scmp.ne.s32.totalorder %s46, %s62
      %p64 = scmp.eq.s32.totalorder %s26, 0
      %p65 = por %p63, %p64
      %s66 = ssub.s32 %s28, %s35
      %p67 = scmp.eq.s32.totalorder %s66, 0
      %s69 = sadd.s32 %s68, 1
      %s70 = scalar_select %p67, %s68, %s69
      %p73 = pneg %p67
      %p74 = scmp.eq.s32.totalorder %s20, 7
      %p75 = por %p73, %p74
      %p76 = scmp.ne.s32.totalorder %s68, %s71
      %p77 = scmp.eq.s32.totalorder %s20, 0
      %p78 = por %p76, %p77
      %p79 = scmp.ne.s32.totalorder %s68, %s71
      %p80 = scmp.eq.s32.totalorder %s25, 7
      %p81 = por %p79, %p80
      %p82 = scmp.ne.s32.totalorder %s71, %s72
      %p83 = scmp.eq.s32.totalorder %s25, 0
      %p84 = por %p82, %p83
      %p85 = scmp.ne.s32.totalorder %s71, %s72
      %p86 = scmp.eq.s32.totalorder %s26, 7
      %p87 = por %p85, %p86
      %p89 = scmp.ne.s32.totalorder %s72, %s88
      %p90 = scmp.eq.s32.totalorder %s26, 0
      %p91 = por %p89, %p90
      %s92 = ssub.s32 %s28, %s35
      %p93 = scmp.eq.s32.totalorder %s92, 0
      %s95 = sadd.s32 %s94, 1
      %s96 = scalar_select %p93, %s94, %s95
      %p99 = pneg %p93
      %p100 = scmp.eq.s32.totalorder %s20, 7
      %p101 = por %p99, %p100
      %p102 = scmp.ne.s32.totalorder %s94, %s97
      %p103 = scmp.eq.s32.totalorder %s20, 0
      %p104 = por %p102, %p103
      %p105 = scmp.ne.s32.totalorder %s94, %s97
      %p106 = scmp.eq.s32.totalorder %s25, 7
      %p107 = por %p105, %p106
      %p108 = scmp.ne.s32.totalorder %s97, %s98
      %p109 = scmp.eq.s32.totalorder %s25, 0
      %p110 = por %p108, %p109
      %p111 = scmp.ne.s32.totalorder %s97, %s98
      %p112 = scmp.eq.s32.totalorder %s26, 7
      %p113 = por %p111, %p112
      %p115 = scmp.ne.s32.totalorder %s98, %s114
      %p116 = scmp.eq.s32.totalorder %s26, 0
      %p117 = por %p115, %p116
      %s118 = ssub.s32 %s28, %s35
      %p119 = scmp.eq.s32.totalorder %s118, 0
      %s121 = sadd.s32 %s120, 1
      %s122 = scalar_select %p119, %s120, %s121
      %p125 = pneg %p119
      %p126 = scmp.eq.s32.totalorder %s20, 7
      %p127 = por %p125, %p126
      %p128 = scmp.ne.s32.totalorder %s120, %s123
      %p129 = scmp.eq.s32.totalorder %s20, 0
      %p130 = por %p128, %p129
      %p131 = scmp.ne.s32.totalorder %s120, %s123
      %p132 = scmp.eq.s32.totalorder %s25, 7
      %p133 = por %p131, %p132
      %p134 = scmp.ne.s32.totalorder %s123, %s124
      %p135 = scmp.eq.s32.totalorder %s25, 0
      %p136 = por %p134, %p135
      %p137 = scmp.ne.s32.totalorder %s123, %s124
      %p138 = scmp.eq.s32.totalorder %s26, 7
      %p139 = por %p137, %p138
      %p141 = scmp.ne.s32.totalorder %s124, %s140
      %p142 = scmp.eq.s32.totalorder %s26, 0
      %p143 = por %p141, %p142
      %s145 = sadd.s32 %s144, 1
      %p148 = scmp.eq.s32.totalorder %s20, 7
      %p149 = scmp.ne.s32.totalorder %s144, %s146
      %p150 = scmp.eq.s32.totalorder %s20, 0
      %p151 = por %p149, %p150
      %p152 = scmp.ne.s32.totalorder %s144, %s146
      %p153 = scmp.eq.s32.totalorder %s25, 7
      %p154 = por %p152, %p153
      %p155 = scmp.ne.s32.totalorder %s146, %s147
      %p156 = scmp.eq.s32.totalorder %s25, 0
      %p157 = por %p155, %p156
      %p158 = scmp.ne.s32.totalorder %s146, %s147
      %p159 = scmp.eq.s32.totalorder %s26, 7
      %p160 = por %p158, %p159
      %p162 = scmp.ne.s32.totalorder %s147, %s161
      %p163 = scmp.eq.s32.totalorder %s26, 0
      %p164 = por %p162, %p163
      %s165 = ssub.s32 %s27, %s39
      %p166 = scmp.eq.s32.totalorder %s165, 0
      %s168 = sadd.s32 %s167, 1
      %s169 = scalar_select %p166, %s167, %s168
      %p172 = pneg %p166
      %p173 = scmp.eq.s32.totalorder %s20, 7
      %p174 = por %p172, %p173
      %p175 = scmp.ne.s32.totalorder %s167, %s170
      %p176 = scmp.eq.s32.totalorder %s20, 0
      %p177 = por %p175, %p176
      %p178 = scmp.ne.s32.totalorder %s167, %s170
      %p179 = scmp.eq.s32.totalorder %s25, 7
      %p180 = por %p178, %p179
      %p181 = scmp.ne.s32.totalorder %s170, %s171
      %p182 = scmp.eq.s32.totalorder %s25, 0
      %p183 = por %p181, %p182
      %p184 = scmp.ne.s32.totalorder %s170, %s171
      %p185 = scmp.eq.s32.totalorder %s26, 7
      %p186 = por %p184, %p185
      %p188 = scmp.ne.s32.totalorder %s171, %s187
      %p189 = scmp.eq.s32.totalorder %s26, 0
      %p190 = por %p188, %p189
      %p191 = scmp.le.s32.totalorder 1, %s20
      %p192 = scmp.lt.s32.totalorder %s20, 9
      %p193 = pnand %p191, %p192
      %p194 = pneg %p193
      // Predicated region
      $region9: #{tpu_custom_call.1} parent=5 // pred_check
        _
      $region10: #{tpu_custom_call.1} parent=5 // pred_check_branch
        %196 = sbr.rel (%p193) target = $region12
      $region11: #{tpu_custom_call.1} parent=5 // pred_region
        %s197 = ssub.s32 %s20, 1
        // Predicated region
        $region13: #{tpu_custom_call.1} parent=11 // pred_check
          %p198 = pneg %p157
        $region14: #{tpu_custom_call.1} parent=11 // pred_check_branch
          %200 = sbr.rel (%p198) target = $region16
        $region15: #{tpu_custom_call.1} parent=11 // pred_region
          _
        $region16: #{tpu_custom_call.1} parent=11 // pred_fallthru
          _
      $region12: #{tpu_custom_call.1} parent=5 // pred_fallthru
        _
      %p201 = scmp.lt.s32.totalorder %s20, 8
      // Predicated region
      $region17: #{tpu_custom_call.1} parent=5 // pred_check
        %p202 = pneg %p201
      $region18: #{tpu_custom_call.1} parent=5 // pred_check_branch
        %204 = sbr.rel (%p202) target = $region20
      $region19: #{tpu_custom_call.1} parent=5 // pred_region
        // Predicated region
        $region21: #{tpu_custom_call.1} parent=19 // pred_check
          %p205 = pneg %p52
        $region22: #{tpu_custom_call.1} parent=19 // pred_check_branch
          %207 = sbr.rel (%p205) target = $region24
        $region23: #{tpu_custom_call.1} parent=19 // pred_region
          %s208 = sand.u32 %s42, 1
          %s209 = scalar_lea.sflag [#allocation3], %s208
          %s210 = sand.u32 %s42, 1
          %s211 = smul.addr %s210, 8
          %s212 = scalar_lea.vmem [#allocation2], %s211
          %s214 = ssub.s32 128, 128
          %215 = vsyncadd %s209, %s214
          %s216 = smul.addr %s27, 128
          %s217 = scalar_lea.hbm %s0, %s216
          %s219 = sshll.u32 %s212, 4
          %s220 = int_to_ptr.vmem [resolvable:$true] %s219
          %222 = dma.hbm_to_vmem [thread:$0]  %s217, 128, %s220, %s209
        $region24: #{tpu_custom_call.1} parent=19 // pred_fallthru
          _
        // Predicated region
        $region25: #{tpu_custom_call.1} parent=19 // pred_check
          %p223 = pneg %p78
        $region26: #{tpu_custom_call.1} parent=19 // pred_check_branch
          %225 = sbr.rel (%p223) target = $region28
        $region27: #{tpu_custom_call.1} parent=19 // pred_region
          %s226 = sand.u32 %s20, 1
          %s227 = scalar_lea.sflag [#allocation6], %s226
          %s228 = sand.u32 %s68, 1
          %s229 = smul.addr %s228, 64
          %s230 = scalar_lea.vmem [#allocation5], %s229
          %s232 = ssub.s32 1024, 1024
          %233 = vsyncadd %s227, %s232
          %s234 = smul.addr %s28, 64
          %s235 = scalar_lea.hbm %s1, %s234
          %s236 = sshll.u32 %s230, 4
          %s237 = int_to_ptr.vmem [resolvable:$true] %s236
          %242 = dma.hbm_to_vmem [thread:$0]  %s235, 1024, %s237, %s227, 256, 64, 4
        $region28: #{tpu_custom_call.1} parent=19 // pred_fallthru
          _
        // Predicated region
        $region29: #{tpu_custom_call.1} parent=19 // pred_check
          %p243 = pneg %p104
        $region30: #{tpu_custom_call.1} parent=19 // pred_check_branch
          %245 = sbr.rel (%p243) target = $region32
        $region31: #{tpu_custom_call.1} parent=19 // pred_region
          %p246 = scmp.lt.s32.totalorder %s28, 3
          %s247 = scalar_select %p246, %s28, 3
          %s248 = scalar_lea.vmem %s2, %s247
        $region32: #{tpu_custom_call.1} parent=19 // pred_fallthru
          _
        // Predicated region
        $region33: #{tpu_custom_call.1} parent=19 // pred_check
          %p249 = pneg %p130
        $region34: #{tpu_custom_call.1} parent=19 // pred_check_branch
          %251 = sbr.rel (%p249) target = $region36
        $region35: #{tpu_custom_call.1} parent=19 // pred_region
          %s252 = sand.u32 %s20, 1
          %s253 = scalar_lea.sflag [#allocation6], %s252
          %s254 = sand.u32 %s120, 1
          %s255 = smul.addr %s254, 64
          %s256 = scalar_lea.vmem [#allocation7], %s255
          %s257 = smul.u32 16, %s28
          %s259 = ssub.s32 1024, 1024
          %260 = vsyncadd %s253, %s259
          %s261 = smul.addr %s257, 64
          %s262 = scalar_lea.hbm %s3, %s261
          %s263 = sshll.u32 %s256, 4
          %s264 = int_to_ptr.vmem [resolvable:$true] %s263
          %269 = dma.hbm_to_vmem [thread:$0]  %s262, 1024, %s264, %s253, 64, 64, 4
        $region36: #{tpu_custom_call.1} parent=19 // pred_fallthru
          _
      $region20: #{tpu_custom_call.1} parent=5 // pred_fallthru
        _
      %p270 = scmp.le.s32.totalorder 1, %s20
      %p271 = scmp.lt.s32.totalorder %s20, 9
      %p272 = pnand %p270, %p271
      %p273 = pneg %p272
      // Predicated region
      $region37: #{tpu_custom_call.1} parent=5 // pred_check
        _
      $region38: #{tpu_custom_call.1} parent=5 // pred_check_branch
        %275 = sbr.rel (%p272) target = $region40
      $region39: #{tpu_custom_call.1} parent=5 // pred_region
        %s276 = ssub.s32 %s20, 1
        %s277 = sand.u32 %s45, 1
        %s278 = scalar_lea.sflag [#allocation3], %s277
        %s279 = sand.u32 %s45, 1
        %s280 = smul.addr %s279, 8
        %s281 = scalar_lea.vmem [#allocation2], %s280
        // Predicated region
        $region41: #{tpu_custom_call.1} parent=39 // pred_check
          %p282 = pneg %p58
        $region42: #{tpu_custom_call.1} parent=39 // pred_check_branch
          %284 = sbr.rel (%p282) target = $region44
        $region43: #{tpu_custom_call.1} parent=39 // pred_region
          %285 = dma.done %s278, 128
        $region44: #{tpu_custom_call.1} parent=39 // pred_fallthru
          _
        %s286 = sand.u32 %s25, 1
        %s287 = scalar_lea.sflag [#allocation6], %s286
        %s288 = sand.u32 %s71, 1
        %s289 = smul.addr %s288, 64
        %s290 = scalar_lea.vmem [#allocation5], %s289
        // Predicated region
        $region45: #{tpu_custom_call.1} parent=39 // pred_check
          %p291 = pneg %p84
        $region46: #{tpu_custom_call.1} parent=39 // pred_check_branch
          %293 = sbr.rel (%p291) target = $region48
        $region47: #{tpu_custom_call.1} parent=39 // pred_region
          %294 = dma.done %s287, 1024
        $region48: #{tpu_custom_call.1} parent=39 // pred_fallthru
          _
        %s295 = sand.u32 %s25, 1
        %s296 = scalar_lea.sflag [#allocation6], %s295
        %s297 = sand.u32 %s123, 1
        %s298 = smul.addr %s297, 64
        %s299 = scalar_lea.vmem [#allocation7], %s298
        // Predicated region
        $region49: #{tpu_custom_call.1} parent=39 // pred_check
          %p300 = pneg %p136
        $region50: #{tpu_custom_call.1} parent=39 // pred_check_branch
          %302 = sbr.rel (%p300) target = $region52
        $region51: #{tpu_custom_call.1} parent=39 // pred_region
          %303 = dma.done %s296, 1024
        $region52: #{tpu_custom_call.1} parent=39 // pred_fallthru
          _
        %s304 = sand.u32 %s45, 1
        %s305 = scalar_lea.sflag [#allocation3], %s304
        %s306 = sand.u32 %s45, 1
        %s307 = smul.addr %s306, 8
        %s308 = scalar_lea.vmem [#allocation2], %s307
        %p309 = pneg %p58
        %p310 = pneg %p55
        %s311 = sand.u32 %s25, 1
        %s312 = scalar_lea.sflag [#allocation6], %s311
        %s313 = sand.u32 %s71, 1
        %s314 = smul.addr %s313, 64
        %s315 = scalar_lea.vmem [#allocation5], %s314
        %p316 = pneg %p84
        %p317 = pneg %p81
        %p318 = scmp.lt.s32.totalorder %s30, 3
        %s319 = scalar_select %p318, %s30, 3
        %s320 = scalar_lea.vmem %s2, %s319
        %p321 = pneg %p110
        %p322 = pneg %p107
        %s323 = sand.u32 %s25, 1
        %s324 = scalar_lea.sflag [#allocation6], %s323
        %s325 = sand.u32 %s123, 1
        %s326 = smul.addr %s325, 64
        %s327 = scalar_lea.vmem [#allocation7], %s326
        %p328 = pneg %p136
        %p329 = pneg %p133
        %p330 = pneg %p157
        %p331 = pneg %p154
        %p332 = pneg %p183
        %p333 = pneg %p180
        %s334 = sand.u32 %s170, 1
        %s335 = scalar_lea.sflag [#allocation4], %s334
        %s336 = sand.u32 %s170, 1
        %s337 = smul.addr %s336, 8
        %s338 = scalar_lea.vmem [#allocation8], %s337
        %p339 = scmp.lt.s32.totalorder %s30, 3
        %s340 = scalar_select %p339, %s30, 3
        %s341 = scalar_lea.vmem %s2, %s340
        %s342 = smul.u32 16, %s30
        %p344 = scmp.eq.s32.totalorder %s30, 0
        // Predicated region
        $region53: #{tpu_custom_call.1} parent=39 // pred_check
          %p345 = pneg %p344
        $region54: #{tpu_custom_call.1} parent=39 // pred_check_branch
          %347 = sbr.rel (%p345) target = $region56
        $region55: #{tpu_custom_call.1} parent=39 // pred_region
          %348 = vst [vmem:[%s338] sm:$0xff] 0.0
        $region56: #{tpu_custom_call.1} parent=39 // pred_fallthru
          _
        %v349 = vld [vmem:[%s281] sm:$0xff]
        %v350 = vpack.c.bf16 %v349, %v349
        %v351 = vld [vmem:[%s290] sm:$0xf]
        %v352 = vld [vmem:[%s290 + $0x4] sm:$0xf]
        %v353 = vld [vmem:[%s290 + $0x8] sm:$0xf]
        %v354 = vld [vmem:[%s290 + $0xc] sm:$0xf]
        %v355 = vld [vmem:[%s290 + $0x10] sm:$0xf]
        %v356 = vld [vmem:[%s290 + $0x14] sm:$0xf]
        %v357 = vld [vmem:[%s290 + $0x18] sm:$0xf]
        %v358 = vld [vmem:[%s290 + $0x1c] sm:$0xf]
        %v359 = vld [vmem:[%s290 + $0x20] sm:$0xf]
        %v360 = vld [vmem:[%s290 + $0x24] sm:$0xf]
        %v361 = vld [vmem:[%s290 + $0x28] sm:$0xf]
        %v362 = vld [vmem:[%s290 + $0x2c] sm:$0xf]
        %v363 = vld [vmem:[%s290 + $0x30] sm:$0xf]
        %v364 = vld [vmem:[%s290 + $0x34] sm:$0xf]
        %v365 = vld [vmem:[%s290 + $0x38] sm:$0xf]
        %v366 = vld [vmem:[%s290 + $0x3c] sm:$0xf]
        %v367 = vld [vmem:[%s341] sm:$0x1]
        %v369 = vlaneseq
        %v370 = vshrl.u32 %v369, 7
        %v371 = vsub.s32 0, %v370
        %v372 = vrot.slane %v367, %v371
        %v390 = vunpack.c.l.b16 %v351
        %v391 = vunpack.c.l.b16 %v352
        %v392 = vunpack.c.l.b16 %v353
        %v393 = vunpack.c.l.b16 %v354
        %v394 = vunpack.c.l.b16 %v355
        %v395 = vunpack.c.l.b16 %v356
        %v396 = vunpack.c.l.b16 %v357
        %v397 = vunpack.c.l.b16 %v358
        %v398 = vunpack.c.l.b16 %v359
        %v399 = vunpack.c.l.b16 %v360
        %v400 = vunpack.c.l.b16 %v361
        %v401 = vunpack.c.l.b16 %v362
        %v402 = vunpack.c.l.b16 %v363
        %v403 = vunpack.c.l.b16 %v364
        %v404 = vunpack.c.l.b16 %v365
        %v405 = vunpack.c.l.b16 %v366
        %v406 = vpack.c.b16 %v391, %v390
        %v407 = vpack.c.b16 %v393, %v392
        %v408 = vpack.c.b16 %v395, %v394
        %v409 = vpack.c.b16 %v397, %v396
        %v410 = vpack.c.b16 %v399, %v398
        %v411 = vpack.c.b16 %v401, %v400
        %v412 = vpack.c.b16 %v403, %v402
        %v413 = vpack.c.b16 %v405, %v404
        %422 = vmatprep.subr.bf16.mxu0 0
        %423 = vmatpush1.bf16.msra.mxu0 %v406
        %424 = vmatprep.subr.bf16.mxu0 0
        %425 = vmatpush1.bf16.msra.mxu0 %v407
        %426 = vmatprep.subr.bf16.mxu0 0
        %427 = vmatpush1.bf16.msra.mxu0 %v408
        %428 = vmatprep.subr.bf16.mxu0 0
        %429 = vmatpush1.bf16.msra.mxu0 %v409
        %430 = vmatprep.subr.bf16.mxu0 0
        %431 = vmatpush1.bf16.msra.mxu0 %v410
        %432 = vmatprep.subr.bf16.mxu0 0
        %433 = vmatpush1.bf16.msra.mxu0 %v411
        %434 = vmatprep.subr.bf16.mxu0 0
        %435 = vmatpush1.bf16.msra.mxu0 %v412
        %436 = vmatprep.subr.bf16.mxu0 0
        %437 = vmatpush1.bf16.msra.mxu0 %v413
        %438 = vmatprep.subr.bf16.mxu0 0
        %439 = vmatpush1.bf16.msra.mxu0 0
        %440 = vmatprep.subr.bf16.mxu0 0
        %441 = vmatpush1.bf16.msra.mxu0 0
        %442 = vmatprep.subr.bf16.mxu0 0
        %443 = vmatpush1.bf16.msra.mxu0 0
        %444 = vmatprep.subr.bf16.mxu0 0
        %445 = vmatpush1.bf16.msra.mxu0 0
        %446 = vmatprep.subr.bf16.mxu0 0
        %447 = vmatpush1.bf16.msra.mxu0 0
        %448 = vmatprep.subr.bf16.mxu0 0
        %449 = vmatpush1.bf16.msra.mxu0 0
        %450 = vmatprep.subr.bf16.mxu0 0
        %451 = vmatpush1.bf16.msra.mxu0 0
        %452 = vmatprep.subr.bf16.mxu0 0
        %453 = vmatpush1.bf16.msra.mxu0 0
        %454 = vmatprep.mubr.bf16.mxu0 0
        %455 = vmatmul.mubr.bf16.gmra.mrb[0].mxu0 %v350
        %v456 = vpop.f32.mrb[0].mxu0
        %v457 = vadd.f32 %v372, %v456
        %v458 = vpop.f32.mrb[0].mxu0
        %v459 = vpop.f32.mrb[0].mxu0
        %v460 = vpop.f32.mrb[0].mxu0
        %461 = vdwg.mxu0
        %v462 = vmul.f32 %v457, %v457
        %v463 = vmul.f32 %v457, 0.5
        %v464 = vmul.f32 %v457, 0.7978846
        %v465 = vmul.f32 %v462, 0.044715
        %v466 = vadd.f32 %v465, 1.0
        %v467 = vmul.f32 %v464, %v466
        %v468 = vtanh.pop %v467
        %v469 = vadd.f32 %v468, 1.0
        %v470 = vmul.f32 %v463, %v469
        %v471 = vld [vmem:[%s338] sm:$0xff]
        %v472 = vpack.c.bf16 %v470, %v470
        %v473 = vld [vmem:[%s299] sm:$0xf]
        %v474 = vld [vmem:[%s299 + $0x4] sm:$0xf]
        %v475 = vld [vmem:[%s299 + $0x8] sm:$0xf]
        %v476 = vld [vmem:[%s299 + $0xc] sm:$0xf]
        %v477 = vld [vmem:[%s299 + $0x10] sm:$0xf]
        %v478 = vld [vmem:[%s299 + $0x14] sm:$0xf]
        %v479 = vld [vmem:[%s299 + $0x18] sm:$0xf]
        %v480 = vld [vmem:[%s299 + $0x1c] sm:$0xf]
        %v481 = vld [vmem:[%s299 + $0x20] sm:$0xf]
        %v482 = vld [vmem:[%s299 + $0x24] sm:$0xf]
        %v483 = vld [vmem:[%s299 + $0x28] sm:$0xf]
        %v484 = vld [vmem:[%s299 + $0x2c] sm:$0xf]
        %v485 = vld [vmem:[%s299 + $0x30] sm:$0xf]
        %v486 = vld [vmem:[%s299 + $0x34] sm:$0xf]
        %v487 = vld [vmem:[%s299 + $0x38] sm:$0xf]
        %v488 = vld [vmem:[%s299 + $0x3c] sm:$0xf]
        %v505 = vunpack.c.l.b16 %v473
        %v506 = vunpack.c.l.b16 %v474
        %v507 = vunpack.c.l.b16 %v475
        %v508 = vunpack.c.l.b16 %v476
        %v509 = vunpack.c.l.b16 %v477
        %v510 = vunpack.c.l.b16 %v478
        %v511 = vunpack.c.l.b16 %v479
        %v512 = vunpack.c.l.b16 %v480
        %v513 = vunpack.c.l.b16 %v481
        %v514 = vunpack.c.l.b16 %v482
        %v515 = vunpack.c.l.b16 %v483
        %v516 = vunpack.c.l.b16 %v484
        %v517 = vunpack.c.l.b16 %v485
        %v518 = vunpack.c.l.b16 %v486
        %v519 = vunpack.c.l.b16 %v487
        %v520 = vunpack.c.l.b16 %v488
        %v521 = vpack.c.b16 %v506, %v505
        %v522 = vpack.c.b16 %v508, %v507
        %v523 = vpack.c.b16 %v510, %v509
        %v524 = vpack.c.b16 %v512, %v511
        %v525 = vpack.c.b16 %v514, %v513
        %v526 = vpack.c.b16 %v516, %v515
        %v527 = vpack.c.b16 %v518, %v517
        %v528 = vpack.c.b16 %v520, %v519
        %537 = vmatprep.subr.bf16.mxu0 0
        %538 = vmatpush1.bf16.msra.mxu0 %v521
        %539 = vmatprep.subr.bf16.mxu0 0
        %540 = vmatpush1.bf16.msra.mxu0 %v522
        %541 = vmatprep.subr.bf16.mxu0 0
        %542 = vmatpush1.bf16.msra.mxu0 %v523
        %543 = vmatprep.subr.bf16.mxu0 0
        %544 = vmatpush1.bf16.msra.mxu0 %v524
        %545 = vmatprep.subr.bf16.mxu0 0
        %546 = vmatpush1.bf16.msra.mxu0 %v525
        %547 = vmatprep.subr.bf16.mxu0 0
        %548 = vmatpush1.bf16.msra.mxu0 %v526
        %549 = vmatprep.subr.bf16.mxu0 0
        %550 = vmatpush1.bf16.msra.mxu0 %v527
        %551 = vmatprep.subr.bf16.mxu0 0
        %552 = vmatpush1.bf16.msra.mxu0 %v528
        %553 = vmatprep.subr.bf16.mxu0 0
        %554 = vmatpush1.bf16.msra.mxu0 0
        %555 = vmatprep.subr.bf16.mxu0 0
        %556 = vmatpush1.bf16.msra.mxu0 0
        %557 = vmatprep.subr.bf16.mxu0 0
        %558 = vmatpush1.bf16.msra.mxu0 0
        %559 = vmatprep.subr.bf16.mxu0 0
        %560 = vmatpush1.bf16.msra.mxu0 0
        %561 = vmatprep.subr.bf16.mxu0 0
        %562 = vmatpush1.bf16.msra.mxu0 0
        %563 = vmatprep.subr.bf16.mxu0 0
        %564 = vmatpush1.bf16.msra.mxu0 0
        %565 = vmatprep.subr.bf16.mxu0 0
        %566 = vmatpush1.bf16.msra.mxu0 0
        %567 = vmatprep.subr.bf16.mxu0 0
        %568 = vmatpush1.bf16.msra.mxu0 0
        %569 = vmatprep.mubr.bf16.mxu0 0
        %570 = vmatmul.mubr.bf16.gmra.mrb[0].mxu0 %v472
        %v571 = vpop.f32.mrb[0].mxu0
        %v572 = vadd.f32 0.0, %v571
        %v573 = vpop.f32.mrb[0].mxu0
        %v574 = vpop.f32.mrb[0].mxu0
        %v575 = vpop.f32.mrb[0].mxu0
        %576 = vdwg.mxu0
        %v577 = vadd.f32 %v471, %v572
        %578 = vst [vmem:[%s338] sm:$0xff] %v577
        %p579 = scmp.eq.s32.totalorder %s30, 3
        // Predicated region
        $region57: #{tpu_custom_call.1} parent=39 // pred_check
          %p580 = pneg %p579
        $region58: #{tpu_custom_call.1} parent=39 // pred_check_branch
          %582 = sbr.rel (%p580) target = $region60
        $region59: #{tpu_custom_call.1} parent=39 // pred_region
          %v583 = vld [vmem:[%s338] sm:$0xff]
          %v584 = vld [vmem:[%s4] sm:$0x1]
          %v586 = vlaneseq
          %v587 = vshrl.u32 %v586, 7
          %v588 = vsub.s32 0, %v587
          %v589 = vrot.slane %v584, %v588
          %v591 = vadd.f32 %v583, %v589
          %592 = vst [vmem:[%s338] sm:$0xff] %v591
        $region60: #{tpu_custom_call.1} parent=39 // pred_fallthru
          _
        %s593 = sand.u32 %s170, 1
        %s594 = scalar_lea.sflag [#allocation4], %s593
        %s595 = sand.u32 %s170, 1
        %s596 = smul.addr %s595, 8
        %s597 = scalar_lea.vmem [#allocation8], %s596
        // Predicated region
        $region61: #{tpu_custom_call.1} parent=39 // pred_check
          %p598 = pneg %p180
        $region62: #{tpu_custom_call.1} parent=39 // pred_check_branch
          %600 = sbr.rel (%p598) target = $region64
        $region63: #{tpu_custom_call.1} parent=39 // pred_region
          %s602 = ssub.s32 128, 128
          %603 = vsyncadd %s594, %s602
          %s604 = smul.addr %s29, 128
          %s605 = scalar_lea.hbm %s5, %s604
          %s607 = sshll.u32 %s597, 4
          %s608 = int_to_ptr.vmem [resolvable:$true] %s607
          %610 = dma.vmem_to_hbm [thread:$0]  %s608, 128, %s605, %s594
        $region64: #{tpu_custom_call.1} parent=39 // pred_fallthru
          _
      $region40: #{tpu_custom_call.1} parent=5 // pred_fallthru
        _
      %p611 = scmp.le.s32.totalorder 2, %s20
      // Predicated region
      $region65: #{tpu_custom_call.1} parent=5 // pred_check
        %p612 = pneg %p611
      $region66: #{tpu_custom_call.1} parent=5 // pred_check_branch
        %614 = sbr.rel (%p612) target = $region68
      $region67: #{tpu_custom_call.1} parent=5 // pred_region
        %s615 = ssub.s32 %s20, 2
        // Predicated region
        $region69: #{tpu_custom_call.1} parent=67 // pred_check
          %p616 = pneg %p186
        $region70: #{tpu_custom_call.1} parent=67 // pred_check_branch
          %618 = sbr.rel (%p616) target = $region72
        $region71: #{tpu_custom_call.1} parent=67 // pred_region
          %s619 = sand.u32 %s171, 1
          %s620 = scalar_lea.sflag [#allocation4], %s619
          %s621 = sand.u32 %s171, 1
          %s622 = smul.addr %s621, 8
          %s623 = scalar_lea.vmem [#allocation8], %s622
          %624 = dma.done %s620, 128
        $region72: #{tpu_custom_call.1} parent=67 // pred_fallthru
          _
      $region68: #{tpu_custom_call.1} parent=5 // pred_fallthru
        _
    $region6: #{tpu_custom_call.1} parent=1 // loop_footer
      %s24 = sadd.s32 1, %s20
    $region7: #{tpu_custom_call.1} parent=1 // loop_footer_branch
      %19 = sbr.rel target = $region3
    $region8: #{tpu_custom_call.1} parent=1 // loop_exit
      _
    %625 = vsyncpa [#allocation3], 1
    %s626 = scalar_lea.sflag [#allocation3], 1
    %627 = vsyncpa %s626, 1
    %628 = vsyncpa [#allocation6], 1
    %s629 = scalar_lea.sflag [#allocation6], 1
    %630 = vsyncpa %s629, 1
    %631 = vsyncpa [#allocation4], 1
    %s632 = scalar_lea.sflag [#allocation4], 1
    %633 = vsyncpa %s632, 1

</llo_original>
